<compile_context>
chip_gen: v5e
topology: v5e:2x2
jax: 0.10.0
libtpu: 0.0.40
codegen_flags: <defaults>
</compile_context>

<pallas_src>
import functools

import jax
import jax.numpy as jnp
from jax import lax
from jax.experimental import pallas as pl
from jax.experimental.pallas import tpu as pltpu


def self_attention_kernel(x_ref, w_ref, b_ref, gamma_ref, o_ref, qkv_ref,
                          *, use_bf16_exp):
    # x_ref:     (C, Bblk*W)   f32   channels-major, positions on lanes
    # w_ref:     (QKVp, C)     bf16  fused [wq_pad; wk_pad; wv]
    # b_ref:     (QKVp, 1)     f32   fused [bq_pad; bk_pad; bv]
    # gamma_ref: (1,)          f32   SMEM scalar
    # o_ref:     (Bblk, C, W)  f32   output in the original (B, C, W) layout
    # qkv_ref:   (QKVp, Bblk*W) bf16 VMEM scratch
    C = x_ref.shape[0]
    Bblk, _, W = o_ref.shape
    Cqp = (w_ref.shape[0] - C) // 2         # padded q/k channel count (mult. of 8)

    gamma = gamma_ref[0]

    # Batched fused QKV projection for the whole block: one weight push
    # streaming Bblk*W lanes; bias broadcast happens exactly once.
    xb = x_ref[...].astype(jnp.bfloat16)
    qkv = jnp.dot(w_ref[...], xb, preferred_element_type=jnp.float32) + b_ref[...]
    qkv_ref[...] = qkv.astype(jnp.bfloat16)   # park in VMEM; bounds vreg live ranges

    for b in range(Bblk):        # static unroll, Bblk <= 8
        lo = b * W               # static, lane-tile aligned when W % 128 == 0
        q_b = qkv_ref[0:Cqp, lo:lo + W]                  # (Cqp, W) bf16, aligned slice
        k_b = qkv_ref[Cqp:2 * Cqp, lo:lo + W]            # (Cqp, W) bf16
        v_b = qkv_ref[2 * Cqp:2 * Cqp + C, lo:lo + W]    # (C,   W) bf16

        # scores^T: (W_key, W_query) = k^T q, contraction on channel dim 0 of
        # both operands -> no XLU transpose.  Zero-padded rows contribute 0.
        s_kq = lax.dot_general(
            k_b, q_b, dimension_numbers=(((0,), (0,)), ((), ())),
            preferred_element_type=jnp.float32)          # (Wk, Wq) f32

        # softmax over the key axis (sublanes); normalization deferred.
        m = jnp.max(s_kq, axis=0, keepdims=True)         # (1, Wq) f32
        if use_bf16_exp:
            # v6e/v7x: bf16 EUP path; p feeds the MXU directly (no extra cast),
            # denominator accumulated in f32.
            p = jnp.exp((s_kq - m).astype(jnp.bfloat16))             # (Wk, Wq) bf16
            denom = jnp.sum(p.astype(jnp.float32), axis=0, keepdims=True)
        else:
            # v5e and older: no bf16 VPU/EUP -> keep elementwise math in f32.
            p32 = jnp.exp(s_kq - m)
            denom = jnp.sum(p32, axis=0, keepdims=True)
            p = p32.astype(jnp.bfloat16)

        # o_un[c, i] = sum_j v[c, j] * p[j, i]  -> plain matmul, no p transpose.
        o_un = jnp.dot(v_b, p, preferred_element_type=jnp.float32)   # (C, Wq) f32

        # Deferred softmax normalization fused with gamma: one EUP
        # approx-reciprocal + one lane-broadcast multiply.  Residual x is
        # re-read from VMEM only here (keeps it out of the loop's live set).
        scale = gamma * pl.reciprocal(denom, approx=True)            # (1, Wq)
        o_ref[b] = scale * o_un + x_ref[:, lo:lo + W]


def _device_kind():
    try:
        return jax.devices()[0].device_kind.lower()
    except Exception:
        return ""


def _pick_batch_block(B, C, W, QKVp, num_tc):
    """Batch block size: biggest that fits a conservative VMEM budget; single
    grid step on single-TC chips, even step count preferred on dual-TC v7x."""
    if B <= 1:
        return 1
    if W % 128 != 0:
        # Block must equal the full (C, B*W) array for the lane-dim layout
        # constraint; typical attention widths are multiples of 128.
        return B

    def fits(bb):
        blocks = 2 * 2 * bb * C * W * 4          # double-buffered in + out blocks
        scratch = QKVp * bb * W * 2              # bf16 qkv scratch
        working = 12 * W * W                     # f32 scores + p working set
        return blocks + scratch + working <= 16 * 1024 * 1024   # safe on all gens

    candidates = [bb for bb in range(1, min(8, B) + 1) if B % bb == 0 and fits(bb)]
    if not candidates:
        return 1
    if num_tc >= 2:
        even = [bb for bb in candidates if (B // bb) >= 2 and (B // bb) % 2 == 0]
        if even:
            return max(even)
        multi = [bb for bb in candidates if (B // bb) >= 2]
        if multi:
            return max(multi)
    return max(candidates)


def self_attention(x, wq, bq, wk, bk, wv, bv, gamma):
    B, C, W = x.shape
    Cq = wq.shape[0]
    Cqp = -(-Cq // 8) * 8                      # pad q/k rows to a sublane tile
    QKVp = 2 * Cqp + C

    def pad_rows(a, n):
        return jnp.pad(a, ((0, n - a.shape[0]), (0, 0)))

    # One-time parameter prep: fused, row-padded QKV weight (bf16 for the MXU)
    # and bias (f32).  Padding rows are zero -> they produce zero q/k rows that
    # contribute nothing to the channel-contraction scores.
    w_fused = jnp.concatenate(
        [pad_rows(wq, Cqp), pad_rows(wk, Cqp), wv], axis=0).astype(jnp.bfloat16)
    b_fused = jnp.concatenate(
        [pad_rows(bq, Cqp), pad_rows(bk, Cqp), bv], axis=0).astype(jnp.float32)
    gamma = jnp.reshape(gamma, (1,)).astype(jnp.float32)

    kind = _device_kind()
    num_tc = 2 if "v7" in kind else 1
    use_bf16_exp = not any(v in kind for v in ("v2", "v3", "v4", "v5"))

    Bblk = _pick_batch_block(B, C, W, QKVp, num_tc)
    grid = (B // Bblk,)

    # Channels-major, lane-dense layout for the batched projection.
    x_flat = jnp.transpose(x, (1, 0, 2)).reshape(C, B * W)

    flops = int(2 * B * (QKVp * C * W + Cqp * W * W + C * W * W))
    transcendentals = int(B * W * W + B * W)          # exp + approx reciprocal
    bytes_accessed = int(2 * B * C * W * 4 + QKVp * C * 2 + QKVp * 4 + 4)

    kernel = functools.partial(self_attention_kernel, use_bf16_exp=use_bf16_exp)

    return pl.pallas_call(
        kernel,
        out_shape=jax.ShapeDtypeStruct((B, C, W), jnp.float32),
        grid=grid,
        in_specs=[
            pl.BlockSpec((C, Bblk * W), lambda g: (0, g)),              # x (flattened)
            pl.BlockSpec((QKVp, C), lambda g: (0, 0)),                  # fused W (bf16)
            pl.BlockSpec((QKVp, 1), lambda g: (0, 0)),                  # fused bias
            pl.BlockSpec(memory_space=pltpu.MemorySpace.SMEM),          # gamma scalar
        ],
        out_specs=pl.BlockSpec((Bblk, C, W), lambda g: (g, 0, 0)),
        scratch_shapes=[pltpu.VMEM((QKVp, Bblk * W), jnp.bfloat16)],
        compiler_params=pltpu.CompilerParams(
            dimension_semantics=("parallel",)),
        cost_estimate=pl.CostEstimate(flops=flops,
                                      transcendentals=transcendentals,
                                      bytes_accessed=bytes_accessed),
    )(x_flat, w_fused, b_fused, gamma)


def reference(x, wq, bq, wk, bk, wv, bv, gamma):
    # Pure-JAX f32 reference mirroring the PyTorch forward.
    q = jnp.einsum('oc,bcw->bow', wq, x) + bq[None, :, :]          # (B, Cq, W)
    k = jnp.einsum('oc,bcw->bow', wk, x) + bk[None, :, :]          # (B, Cq, W)
    v = jnp.einsum('oc,bcw->bow', wv, x) + bv[None, :, :]          # (B, C,  W)
    attn = jnp.einsum('bcq,bck->bqk', q, k)                        # (B, W, W)
    attn = jax.nn.softmax(attn, axis=2)
    o = jnp.einsum('bcw,bqw->bcq', v, attn)                        # (B, C, W)
    return gamma[0] * o + x


if __name__ == "__main__":
    B, C, W = 2, 32, 128            # in_channels=32 -> query/key channels = 4
    Cq = C // 8

    key = jax.random.PRNGKey(0)
    kx, kwq, kbq, kwk, kbk, kwv, kbv = jax.random.split(key, 7)

    x  = jax.random.normal(kx,  (B, C, W), dtype=jnp.float32)
    wq = jax.random.normal(kwq, (Cq, C), dtype=jnp.float32) * 0.1
    bq = jax.random.normal(kbq, (Cq, 1), dtype=jnp.float32) * 0.1
    wk = jax.random.normal(kwk, (Cq, C), dtype=jnp.float32) * 0.1
    bk = jax.random.normal(kbk, (Cq, 1), dtype=jnp.float32) * 0.1
    wv = jax.random.normal(kwv, (C, C), dtype=jnp.float32) * 0.1
    bv = jax.random.normal(kbv, (C, 1), dtype=jnp.float32) * 0.1
    # PyTorch init is gamma=0 (output == x); use a nonzero value so the
    # attention path is actually exercised and verified.
    gamma = jnp.full((1,), 0.5, dtype=jnp.float32)

    out = jax.block_until_ready(self_attention(x, wq, bq, wk, bk, wv, bv, gamma))
    ref = reference(x, wq, bq, wk, bk, wv, bv, gamma)

    assert out.shape == (B, C, W)
    err = float(jnp.max(jnp.abs(out - ref)))
    # bf16 MXU operands, bf16 exp (v6e/v7x) + approx reciprocal: slightly
    # looser than pure-f32.
    assert jnp.allclose(out, ref, atol=3e-2, rtol=3e-2), f"max abs err {err}"

    print("KERNEL_OK")
</pallas_src>

<mosaic_0001>
module attributes {stable_mosaic.version = 11 : i64} {
  func.func @self_attention_kernel(%arg0: i32, %arg1: memref<32x256xf32, #tpu.memory_space<vmem>>, %arg2: memref<48x32xbf16, #tpu.memory_space<vmem>>, %arg3: memref<48x1xf32, #tpu.memory_space<vmem>>, %arg4: memref<1xf32, #tpu.memory_space<smem>>, %arg5: memref<2x32x128xf32, #tpu.memory_space<vmem>>, %arg6: memref<48x256xbf16, #tpu.memory_space<vmem>>) attributes {dimension_semantics = [#tpu.dimension_semantics<parallel>], iteration_bounds = array<i64: 1>, scalar_prefetch = 0 : i64, scratch_operands = 1 : i64, tpu.core_type = #tpu.core_type<tc>, window_params = [{transform_indices = @transform_0, window_bounds = array<i64: 32, 256>}, {pipeline_mode = #tpu.pipeline_mode<synchronous>, transform_indices = @transform_1, window_bounds = array<i64: 48, 32>}, {pipeline_mode = #tpu.pipeline_mode<synchronous>, transform_indices = @transform_2, window_bounds = array<i64: 48, 1>}, {transform_indices = @transform_3, window_bounds = array<i64: 1>}, {transform_indices = @transform_4, window_bounds = array<i64: 2, 32, 128>}]} {
    %c0 = arith.constant 0 : index
    %0 = memref.load %arg4[%c0] : memref<1xf32, #tpu.memory_space<smem>>
    %c0_0 = arith.constant 0 : index
    %c0_1 = arith.constant 0 : index
    %1 = vector.load %arg1[%c0_0, %c0_1] : memref<32x256xf32, #tpu.memory_space<vmem>>, vector<32x256xf32>
    %2 = arith.truncf %1 : vector<32x256xf32> to vector<32x256xbf16>
    %c0_2 = arith.constant 0 : index
    %c0_3 = arith.constant 0 : index
    %3 = vector.load %arg2[%c0_2, %c0_3] : memref<48x32xbf16, #tpu.memory_space<vmem>>, vector<48x32xbf16>
    %cst = arith.constant dense<0.000000e+00> : vector<48x256xf32>
    %4 = tpu.matmul %3, %2, %cst {dimension_numbers = #tpu.dot_dimension_numbers<[1], [0], [0], [1], [0, 0, 1, 1], [], []>} : vector<48x32xbf16>, vector<32x256xbf16>, vector<48x256xf32> -> vector<48x256xf32>
    %c0_4 = arith.constant 0 : index
    %c0_5 = arith.constant 0 : index
    %5 = vector.load %arg3[%c0_4, %c0_5] : memref<48x1xf32, #tpu.memory_space<vmem>>, vector<48x1xf32>
    %6 = vector.broadcast %5 : vector<48x1xf32> to vector<48x256xf32>
    %7 = arith.addf %4, %6 : vector<48x256xf32>
    %8 = arith.truncf %7 : vector<48x256xf32> to vector<48x256xbf16>
    %c0_6 = arith.constant 0 : index
    %c0_7 = arith.constant 0 : index
    %9 = vector.load %arg6[%c0_6, %c0_7] : memref<48x256xbf16, #tpu.memory_space<vmem>>, vector<48x256xbf16>
    tpu.vector_store %arg6[%c0_6, %c0_7], %8 {strides = array<i32>} : memref<48x256xbf16, #tpu.memory_space<vmem>>, vector<48x256xbf16>,
    %c0_8 = arith.constant 0 : index
    %c0_9 = arith.constant 0 : index
    %10 = vector.load %arg6[%c0_8, %c0_9] : memref<48x256xbf16, #tpu.memory_space<vmem>>, vector<8x128xbf16>
    %c8 = arith.constant 8 : index
    %c0_10 = arith.constant 0 : index
    %11 = vector.load %arg6[%c8, %c0_10] : memref<48x256xbf16, #tpu.memory_space<vmem>>, vector<8x128xbf16>
    %c16 = arith.constant 16 : index
    %c0_11 = arith.constant 0 : index
    %12 = vector.load %arg6[%c16, %c0_11] : memref<48x256xbf16, #tpu.memory_space<vmem>>, vector<32x128xbf16>
    %cst_12 = arith.constant dense<0.000000e+00> : vector<128x128xf32>
    %13 = tpu.matmul %11, %10, %cst_12 {dimension_numbers = #tpu.dot_dimension_numbers<[0], [0], [1], [1], [0, 1, 1, 1], [], []>} : vector<8x128xbf16>, vector<8x128xbf16>, vector<128x128xf32> -> vector<128x128xf32>
    %cst_13 = arith.constant dense<0xFF800000> : vector<128xf32>
    %14 = vector.multi_reduction <maximumf>, %13, %cst_13 [0] : vector<128x128xf32> to vector<128xf32>
    %15 = vector.shape_cast %14 : vector<128xf32> to vector<1x128xf32>
    %16 = vector.broadcast %15 : vector<1x128xf32> to vector<128x128xf32>
    %17 = arith.subf %13, %16 : vector<128x128xf32>
    %18 = arith.truncf %17 : vector<128x128xf32> to vector<128x128xbf16>
    %19 = math.exp %18 : vector<128x128xbf16>
    %20 = arith.extf %19 : vector<128x128xbf16> to vector<128x128xf32>
    %cst_14 = arith.constant dense<0.000000e+00> : vector<128xf32>
    %21 = vector.multi_reduction <add>, %20, %cst_14 [0] : vector<128x128xf32> to vector<128xf32>
    %22 = vector.shape_cast %21 : vector<128xf32> to vector<1x128xf32>
    %cst_15 = arith.constant dense<0.000000e+00> : vector<32x128xf32>
    %23 = tpu.matmul %12, %19, %cst_15 {dimension_numbers = #tpu.dot_dimension_numbers<[1], [0], [0], [1], [0, 0, 1, 1], [], []>} : vector<32x128xbf16>, vector<128x128xbf16>, vector<32x128xf32> -> vector<32x128xf32>
    %24 = tpu.reciprocal %22 {approx = true} : vector<1x128xf32> -> vector<1x128xf32>
    %25 = vector.broadcast %0 : f32 to vector<1x128xf32>
    %26 = arith.mulf %25, %24 : vector<1x128xf32>
    %27 = vector.broadcast %26 : vector<1x128xf32> to vector<32x128xf32>
    %28 = arith.mulf %27, %23 : vector<32x128xf32>
    %c0_16 = arith.constant 0 : index
    %c0_17 = arith.constant 0 : index
    %29 = vector.load %arg1[%c0_16, %c0_17] : memref<32x256xf32, #tpu.memory_space<vmem>>, vector<32x128xf32>
    %30 = arith.addf %28, %29 : vector<32x128xf32>
    %c0_18 = arith.constant 0 : index
    %c0_19 = arith.constant 0 : index
    %c0_20 = arith.constant 0 : index
    %31 = vector.load %arg5[%c0_18, %c0_19, %c0_20] : memref<2x32x128xf32, #tpu.memory_space<vmem>>, vector<1x32x128xf32>
    %32 = vector.shape_cast %31 : vector<1x32x128xf32> to vector<32x128xf32>
    %33 = vector.shape_cast %30 : vector<32x128xf32> to vector<1x32x128xf32>
    tpu.vector_store %arg5[%c0_18, %c0_19, %c0_20], %33 {strides = array<i32>} : memref<2x32x128xf32, #tpu.memory_space<vmem>>, vector<1x32x128xf32>,
    %c0_21 = arith.constant 0 : index
    %c128 = arith.constant 128 : index
    %34 = vector.load %arg6[%c0_21, %c128] : memref<48x256xbf16, #tpu.memory_space<vmem>>, vector<8x128xbf16>
    %c8_22 = arith.constant 8 : index
    %c128_23 = arith.constant 128 : index
    %35 = vector.load %arg6[%c8_22, %c128_23] : memref<48x256xbf16, #tpu.memory_space<vmem>>, vector<8x128xbf16>
    %c16_24 = arith.constant 16 : index
    %c128_25 = arith.constant 128 : index
    %36 = vector.load %arg6[%c16_24, %c128_25] : memref<48x256xbf16, #tpu.memory_space<vmem>>, vector<32x128xbf16>
    %cst_26 = arith.constant dense<0.000000e+00> : vector<128x128xf32>
    %37 = tpu.matmul %35, %34, %cst_26 {dimension_numbers = #tpu.dot_dimension_numbers<[0], [0], [1], [1], [0, 1, 1, 1], [], []>} : vector<8x128xbf16>, vector<8x128xbf16>, vector<128x128xf32> -> vector<128x128xf32>
    %cst_27 = arith.constant dense<0xFF800000> : vector<128xf32>
    %38 = vector.multi_reduction <maximumf>, %37, %cst_27 [0] : vector<128x128xf32> to vector<128xf32>
    %39 = vector.shape_cast %38 : vector<128xf32> to vector<1x128xf32>
    %40 = vector.broadcast %39 : vector<1x128xf32> to vector<128x128xf32>
    %41 = arith.subf %37, %40 : vector<128x128xf32>
    %42 = arith.truncf %41 : vector<128x128xf32> to vector<128x128xbf16>
    %43 = math.exp %42 : vector<128x128xbf16>
    %44 = arith.extf %43 : vector<128x128xbf16> to vector<128x128xf32>
    %cst_28 = arith.constant dense<0.000000e+00> : vector<128xf32>
    %45 = vector.multi_reduction <add>, %44, %cst_28 [0] : vector<128x128xf32> to vector<128xf32>
    %46 = vector.shape_cast %45 : vector<128xf32> to vector<1x128xf32>
    %cst_29 = arith.constant dense<0.000000e+00> : vector<32x128xf32>
    %47 = tpu.matmul %36, %43, %cst_29 {dimension_numbers = #tpu.dot_dimension_numbers<[1], [0], [0], [1], [0, 0, 1, 1], [], []>} : vector<32x128xbf16>, vector<128x128xbf16>, vector<32x128xf32> -> vector<32x128xf32>
    %48 = tpu.reciprocal %46 {approx = true} : vector<1x128xf32> -> vector<1x128xf32>
    %49 = vector.broadcast %0 : f32 to vector<1x128xf32>
    %50 = arith.mulf %49, %48 : vector<1x128xf32>
    %51 = vector.broadcast %50 : vector<1x128xf32> to vector<32x128xf32>
    %52 = arith.mulf %51, %47 : vector<32x128xf32>
    %c0_30 = arith.constant 0 : index
    %c128_31 = arith.constant 128 : index
    %53 = vector.load %arg1[%c0_30, %c128_31] : memref<32x256xf32, #tpu.memory_space<vmem>>, vector<32x128xf32>
    %54 = arith.addf %52, %53 : vector<32x128xf32>
    %c1 = arith.constant 1 : index
    %c0_32 = arith.constant 0 : index
    %c0_33 = arith.constant 0 : index
    %55 = vector.load %arg5[%c1, %c0_32, %c0_33] : memref<2x32x128xf32, #tpu.memory_space<vmem>>, vector<1x32x128xf32>
    %56 = vector.shape_cast %55 : vector<1x32x128xf32> to vector<32x128xf32>
    %57 = vector.shape_cast %54 : vector<32x128xf32> to vector<1x32x128xf32>
    tpu.vector_store %arg5[%c1, %c0_32, %c0_33], %57 {strides = array<i32>} : memref<2x32x128xf32, #tpu.memory_space<vmem>>, vector<1x32x128xf32>,
    return
  }
  func.func @transform_0(%arg0: i32) -> (i32, i32) {
    %c0_i32 = arith.constant 0 : i32
    %c0_i32_0 = arith.constant 0 : i32
    return %c0_i32, %arg0 : i32, i32
  }
  func.func @transform_1(%arg0: i32) -> (i32, i32) {
    %c0_i32 = arith.constant 0 : i32
    %c0_i32_0 = arith.constant 0 : i32
    %c0_i32_1 = arith.constant 0 : i32
    return %c0_i32, %c0_i32_0 : i32, i32
  }
  func.func @transform_2(%arg0: i32) -> (i32, i32) {
    %c0_i32 = arith.constant 0 : i32
    %c0_i32_0 = arith.constant 0 : i32
    %c0_i32_1 = arith.constant 0 : i32
    return %c0_i32, %c0_i32_0 : i32, i32
  }
  func.func @transform_3(%arg0: i32) -> i32 {
    %c0_i32 = arith.constant 0 : i32
    %c0_i32_0 = arith.constant 0 : i32
    return %c0_i32 : i32
  }
  func.func @transform_4(%arg0: i32) -> (i32, i32, i32) {
    %c0_i32 = arith.constant 0 : i32
    %c0_i32_0 = arith.constant 0 : i32
    %c0_i32_1 = arith.constant 0 : i32
    return %arg0, %c0_i32, %c0_i32_0 : i32, i32, i32
  }
}

</mosaic_0001>

<llo_original>
// kernel: tpu_custom_call.1
$region0: #{tpu_custom_call.1}
  #allocation0 [shape = 'u32[]', space=smem, size = 0x4, offset = 0x4, fixed_abs, tag = 'smem constant byte address 0x4 - core index']
  #allocation1 [shape = 'u32[72,128]{1,0:T(1,128)}', space=vmem, size = 0x9000, scoped, tag = 'internal scratch']
  #allocation2 [shape = 'bf16[48,256]{1,0:T(8,128)(2,1)}', space=vmem, size = 0x6000, scoped, tag = 'scratch operand']
  #allocation3 [shape = 'f32[1]{0:T(128)S(6)}', space=smem, size = 0x200, scoped, tag = 'scoped memory for tpu_custom_call.1']
  %s0 = inlined_call_operand.vmem [shape: f32[32,256], index: 0, kind: input, shape index: {}]
  %s1 = inlined_call_operand.vmem [shape: bf16[48,32], index: 1, kind: input, shape index: {}]
  %s2 = inlined_call_operand.vmem [shape: f32[48,1], index: 2, kind: input, shape index: {}]
  %s3 = inlined_call_operand.<no memory space> [shape: f32[1], index: 3, kind: input, shape index: {}]
  %s4 = inlined_call_operand.hbm [shape: f32[2,32,128], index: 4, kind: output, shape index: {}]
  %s5 = sld [smem:[#allocation0]]
  $region26: #{tpu_custom_call.1} parent=0
    _
  %s7 = ssub.s32 1, %s5
  %s8 = scalar_select 0, %s7, %s5
  %9 = sst [smem:[#allocation3]] %s3
  $region1: #{tpu_custom_call.1} parent=0
    #allocation4 [shape = 'u8[32768]{0}', space=vmem, size = 0x8000, scoped, tag = 'output window, operand 0, single buffered']
    #allocation5 [shape = 's32[1]{0}', space=sflag, size = 0x4, scoped, tag = 'scoped memory for tpu_custom_call.1']
    %10 = vsyncpa [#allocation5], 0
    // Predicated region
    $region2: #{tpu_custom_call.1} parent=1 // pred_check
      _
    $region3: #{tpu_custom_call.1} parent=1 // pred_check_branch
      %12 = sbr.rel (0) target = $region5
    $region4: #{tpu_custom_call.1} parent=1 // pred_region
      _
    $region5: #{tpu_custom_call.1} parent=1 // pred_fallthru
      _
    // Predicated region
    $region6: #{tpu_custom_call.1} parent=1 // pred_check
      _
    $region7: #{tpu_custom_call.1} parent=1 // pred_check_branch
      %14 = sbr.rel (0) target = $region9
    $region8: #{tpu_custom_call.1} parent=1 // pred_region
      _
    $region9: #{tpu_custom_call.1} parent=1 // pred_fallthru
      _
    // Predicated region
    $region10: #{tpu_custom_call.1} parent=1 // pred_check
      _
    $region11: #{tpu_custom_call.1} parent=1 // pred_check_branch
      %16 = sbr.rel (0) target = $region13
    $region12: #{tpu_custom_call.1} parent=1 // pred_region
      _
    $region13: #{tpu_custom_call.1} parent=1 // pred_fallthru
      _
    // Predicated region
    $region14: #{tpu_custom_call.1} parent=1 // pred_check
      _
    $region15: #{tpu_custom_call.1} parent=1 // pred_check_branch
      %18 = sbr.rel (0) target = $region17
    $region16: #{tpu_custom_call.1} parent=1 // pred_region
      _
    $region17: #{tpu_custom_call.1} parent=1 // pred_fallthru
      _
    %s20 = sld [smem:[#allocation3]]
    %v21 = vld [vmem:[%s0] sm:$0xff]
    %v22 = vld [vmem:[%s0 + $0x8] sm:$0xff]
    %v23 = vld [vmem:[%s0 + $0x10] sm:$0xff]
    %v24 = vld [vmem:[%s0 + $0x18] sm:$0xff]
    %v25 = vld [vmem:[%s0 + $0x20] sm:$0xff]
    %v26 = vld [vmem:[%s0 + $0x28] sm:$0xff]
    %v27 = vld [vmem:[%s0 + $0x30] sm:$0xff]
    %v28 = vld [vmem:[%s0 + $0x38] sm:$0xff]
    %v29 = vpack.c.bf16 %v23, %v21
    %v30 = vpack.c.bf16 %v24, %v22
    %v31 = vpack.c.bf16 %v27, %v25
    %v32 = vpack.c.bf16 %v28, %v26
    %v33 = vld [vmem:[%s1] sm:$0xf]
    %v34 = vld [vmem:[%s1 + $0x4] sm:$0xf]
    %v35 = vld [vmem:[%s1 + $0x8] sm:$0xf]
    %v36 = vld [vmem:[%s1 + $0xc] sm:$0xf]
    %v37 = vld [vmem:[%s1 + $0x10] sm:$0xf]
    %v38 = vld [vmem:[%s1 + $0x14] sm:$0xf]
    %v39 = vld [vmem:[%s2] sm:$0xff]
    %v40 = vld [vmem:[%s2 + $0x8] sm:$0xff]
    %v41 = vld [vmem:[%s2 + $0x10] sm:$0xff]
    %v42 = vld [vmem:[%s2 + $0x18] sm:$0xff]
    %v43 = vld [vmem:[%s2 + $0x20] sm:$0xff]
    %v44 = vld [vmem:[%s2 + $0x28] sm:$0xff]
    %46 = vset.pattern.permute.xlu0 0
    %47 = vperm.xlu0 %46, %v39
    %v48 = vpop.permute.xlu0 %47
    %51 = vset.pattern.permute.xlu0 0
    %52 = vperm.xlu0 %51, %v40
    %v53 = vpop.permute.xlu0 %52
    %56 = vset.pattern.permute.xlu0 0
    %57 = vperm.xlu0 %56, %v41
    %v58 = vpop.permute.xlu0 %57
    %61 = vset.pattern.permute.xlu0 0
    %62 = vperm.xlu0 %61, %v42
    %v63 = vpop.permute.xlu0 %62
    %66 = vset.pattern.permute.xlu0 0
    %67 = vperm.xlu0 %66, %v43
    %v68 = vpop.permute.xlu0 %67
    %71 = vset.pattern.permute.xlu0 0
    %72 = vperm.xlu0 %71, %v44
    %v73 = vpop.permute.xlu0 %72
    %v81 = vunpack.c.l.b16 %v33
    %v82 = vunpack.c.l.b16 %v34
    %v83 = vunpack.c.l.b16 %v35
    %v84 = vunpack.c.l.b16 %v36
    %v85 = vunpack.c.l.b16 %v37
    %v86 = vunpack.c.l.b16 %v38
    %v87 = vpack.c.b16 %v82, %v81
    %v88 = vpack.c.b16 %v84, %v83
    %v89 = vpack.c.b16 %v86, %v85
    %vm90 = vcmask 261120
    %v92 = vsel %vm90, %v87, 0
    %v95 = vsel %vm90, %v88, 0
    %v98 = vsel %vm90, %v89, 0
    %100 = vmatpush.bf16.msra.mxu0 0
    %101 = vmatpush.bf16.msra.mxu0 0
    %102 = vmatpush.bf16.msra.mxu0 0
    %103 = vmatpush.bf16.msra.mxu0 0
    %104 = vmatpush.bf16.msra.mxu0 0
    %105 = vmatpush.bf16.msra.mxu0 0
    %106 = vmatpush.bf16.msra.mxu0 %v31
    %107 = vmatpush.bf16.msra.mxu0 %v29
    %108 = vmatmul.bf16.gmra.mxu0 %v92
    %v109 = vpop.f32.mrf.mxu0
    %v110 = vadd.f32 %v48, %v109
    %v111 = vpop.f32.mrf.mxu0
    %v112 = vadd.f32 %v53, %v111
    %113 = vmatmul.bf16.gmra.mxu0 %v95
    %v114 = vpop.f32.mrf.mxu0
    %v115 = vadd.f32 %v58, %v114
    %v116 = vpop.f32.mrf.mxu0
    %v117 = vadd.f32 %v63, %v116
    %118 = vmatmul.bf16.gmra.mxu0 %v98
    %v119 = vpop.f32.mrf.mxu0
    %v120 = vadd.f32 %v68, %v119
    %v121 = vpop.f32.mrf.mxu0
    %v122 = vadd.f32 %v73, %v121
    %123 = vdwg.mxu0
    %124 = vmatpush.bf16.msra.mxu0 0
    %125 = vmatpush.bf16.msra.mxu0 0
    %126 = vmatpush.bf16.msra.mxu0 0
    %127 = vmatpush.bf16.msra.mxu0 0
    %128 = vmatpush.bf16.msra.mxu0 0
    %129 = vmatpush.bf16.msra.mxu0 0
    %130 = vmatpush.bf16.msra.mxu0 %v32
    %131 = vmatpush.bf16.msra.mxu0 %v30
    %132 = vmatmul.bf16.gmra.mxu0 %v92
    %v133 = vpop.f32.mrf.mxu0
    %v134 = vadd.f32 %v48, %v133
    %v135 = vpop.f32.mrf.mxu0
    %v136 = vadd.f32 %v53, %v135
    %137 = vmatmul.bf16.gmra.mxu0 %v95
    %v138 = vpop.f32.mrf.mxu0
    %v139 = vadd.f32 %v58, %v138
    %v140 = vpop.f32.mrf.mxu0
    %v141 = vadd.f32 %v63, %v140
    %142 = vmatmul.bf16.gmra.mxu0 %v98
    %v143 = vpop.f32.mrf.mxu0
    %v144 = vadd.f32 %v68, %v143
    %v145 = vpop.f32.mrf.mxu0
    %v146 = vadd.f32 %v73, %v145
    %147 = vdwg.mxu0
    %v148 = vpack.c.bf16 %v134, %v110
    %v149 = vpack.c.bf16 %v136, %v112
    %v150 = vpack.c.bf16 %v139, %v115
    %v151 = vpack.c.bf16 %v141, %v117
    %v152 = vpack.c.bf16 %v144, %v120
    %v153 = vpack.c.bf16 %v146, %v122
    %154 = vst [vmem:[#allocation2] sm:$0xff] %v148
    %155 = vst [vmem:[#allocation2 + $0x8] sm:$0xff] %v149
    %156 = vst [vmem:[#allocation2 + $0x10] sm:$0xff] %v150
    %157 = vst [vmem:[#allocation2 + $0x18] sm:$0xff] %v151
    %158 = vst [vmem:[#allocation2 + $0x20] sm:$0xff] %v152
    %159 = vst [vmem:[#allocation2 + $0x28] sm:$0xff] %v153
    %v160 = vld [vmem:[#allocation2] sm:$0xf]
    %v161 = vld [vmem:[#allocation2 + $0x8] sm:$0xf]
    %v162 = vld [vmem:[#allocation2 + $0x10] sm:$0xf]
    %v163 = vld [vmem:[#allocation2 + $0x18] sm:$0xf]
    %v164 = vld [vmem:[#allocation2 + $0x20] sm:$0xf]
    %v165 = vld [vmem:[#allocation2 + $0x28] sm:$0xf]
    %166 = vxpose.xlu0.c.b16.start [1/8] %v161, 128
    %167 = vxpose.xlu0.c.b16.cont [2/8] 0, 128
    %168 = vxpose.xlu0.c.b16.cont [3/8] 0, 128
    %169 = vxpose.xlu0.c.b16.cont [4/8] 0, 128
    %170 = vxpose.xlu0.c.b16.cont [5/8] 0, 128
    %171 = vxpose.xlu0.c.b16.cont [6/8] 0, 128
    %172 = vxpose.xlu0.c.b16.cont [7/8] 0, 128
    %173 = vxpose.xlu0.c.b16.end [8/8] 0, 128
    %v174 = vpop.trf.xlu0
    %v175 = vpop.trf.xlu0
    %v176 = vpop.trf.xlu0
    %v177 = vpop.trf.xlu0
    %v178 = vpop.trf.xlu0
    %v179 = vpop.trf.xlu0
    %v180 = vpop.trf.xlu0
    %v181 = vpop.trf.xlu0
    %vm182 = vcmask 64512
    %v184 = vsel %vm182, %v174, 0
    %v187 = vsel %vm182, %v175, 0
    %v190 = vsel %vm182, %v176, 0
    %v193 = vsel %vm182, %v177, 0
    %v196 = vsel %vm182, %v178, 0
    %v199 = vsel %vm182, %v179, 0
    %v202 = vsel %vm182, %v180, 0
    %v205 = vsel %vm182, %v181, 0
    %vm207 = vcmask 1043456
    %v209 = vsel %vm207, %v160, 0
    %211 = vmatpush.bf16.msra.mxu0 0
    %212 = vmatpush.bf16.msra.mxu0 0
    %213 = vmatpush.bf16.msra.mxu0 0
    %214 = vmatpush.bf16.msra.mxu0 0
    %215 = vmatpush.bf16.msra.mxu0 0
    %216 = vmatpush.bf16.msra.mxu0 0
    %217 = vmatpush.bf16.msra.mxu0 0
    %218 = vmatpush.bf16.msra.mxu0 %v209
    %219 = vmatmul.bf16.gmra.mxu0 %v184
    %v220 = vpop.f32.mrf.mxu0
    %v221 = vadd.f32 0.0, %v220
    %v222 = vpop.f32.mrf.mxu0
    %v223 = vadd.f32 0.0, %v222
    %224 = vmatmul.bf16.gmra.mxu0 %v187
    %v225 = vpop.f32.mrf.mxu0
    %v226 = vadd.f32 0.0, %v225
    %v227 = vpop.f32.mrf.mxu0
    %v228 = vadd.f32 0.0, %v227
    %229 = vmatmul.bf16.gmra.mxu0 %v190
    %v230 = vpop.f32.mrf.mxu0
    %v231 = vadd.f32 0.0, %v230
    %v232 = vpop.f32.mrf.mxu0
    %v233 = vadd.f32 0.0, %v232
    %234 = vmatmul.bf16.gmra.mxu0 %v193
    %v235 = vpop.f32.mrf.mxu0
    %v236 = vadd.f32 0.0, %v235
    %v237 = vpop.f32.mrf.mxu0
    %v238 = vadd.f32 0.0, %v237
    %239 = vmatmul.bf16.gmra.mxu0 %v196
    %v240 = vpop.f32.mrf.mxu0
    %v241 = vadd.f32 0.0, %v240
    %v242 = vpop.f32.mrf.mxu0
    %v243 = vadd.f32 0.0, %v242
    %244 = vmatmul.bf16.gmra.mxu0 %v199
    %v245 = vpop.f32.mrf.mxu0
    %v246 = vadd.f32 0.0, %v245
    %v247 = vpop.f32.mrf.mxu0
    %v248 = vadd.f32 0.0, %v247
    %249 = vmatmul.bf16.gmra.mxu0 %v202
    %v250 = vpop.f32.mrf.mxu0
    %v251 = vadd.f32 0.0, %v250
    %v252 = vpop.f32.mrf.mxu0
    %v253 = vadd.f32 0.0, %v252
    %254 = vmatmul.bf16.gmra.mxu0 %v205
    %v255 = vpop.f32.mrf.mxu0
    %v256 = vadd.f32 0.0, %v255
    %v257 = vpop.f32.mrf.mxu0
    %v258 = vadd.f32 0.0, %v257
    %259 = vdwg.mxu0
    %v260 = vmax.f32 %v221, %v231
    %v261 = vmax.f32 %v223, %v233
    %v262 = vmax.f32 %v226, %v236
    %v263 = vmax.f32 %v228, %v238
    %v264 = vmax.f32 %v260, %v241
    %v265 = vmax.f32 %v261, %v243
    %v266 = vmax.f32 %v262, %v246
    %v267 = vmax.f32 %v263, %v248
    %v268 = vmax.f32 %v264, %v251
    %v269 = vmax.f32 %v265, %v253
    %v270 = vmax.f32 %v266, %v256
    %v271 = vmax.f32 %v267, %v258
    %v272 = vmax.f32 %v268, %v269
    %v273 = vmax.f32 %v270, %v271
    %v274 = vmax.f32 %v272, %v273
    %v275 = vrot.slane %v274, 4
    %v276 = vmax.f32 %v274, %v275
    %v277 = vrot.slane %v276, 2
    %v278 = vmax.f32 %v276, %v277
    %v279 = vrot.slane %v278, 1
    %v280 = vmax.f32 %v278, %v279
    %v281 = vsub.f32 %v221, %v280
    %v282 = vsub.f32 %v223, %v280
    %v283 = vsub.f32 %v226, %v280
    %v284 = vsub.f32 %v228, %v280
    %v285 = vsub.f32 %v231, %v280
    %v286 = vsub.f32 %v233, %v280
    %v287 = vsub.f32 %v236, %v280
    %v288 = vsub.f32 %v238, %v280
    %v289 = vsub.f32 %v241, %v280
    %v290 = vsub.f32 %v243, %v280
    %v291 = vsub.f32 %v246, %v280
    %v292 = vsub.f32 %v248, %v280
    %v293 = vsub.f32 %v251, %v280
    %v294 = vsub.f32 %v253, %v280
    %v295 = vsub.f32 %v256, %v280
    %v296 = vsub.f32 %v258, %v280
    %v297 = vpack.c.bf16 %v282, %v281
    %v298 = vpack.c.bf16 %v284, %v283
    %v299 = vpack.c.bf16 %v286, %v285
    %v300 = vpack.c.bf16 %v288, %v287
    %v301 = vpack.c.bf16 %v290, %v289
    %v302 = vpack.c.bf16 %v292, %v291
    %v303 = vpack.c.bf16 %v294, %v293
    %v304 = vpack.c.bf16 %v296, %v295
    %v305 = vunpack.c.l.bf16 %v297
    %v306 = vunpack.c.h.bf16 %v297
    %v307 = vunpack.c.l.bf16 %v298
    %v308 = vunpack.c.h.bf16 %v298
    %v309 = vunpack.c.l.bf16 %v299
    %v310 = vunpack.c.h.bf16 %v299
    %v311 = vunpack.c.l.bf16 %v300
    %v312 = vunpack.c.h.bf16 %v300
    %v313 = vunpack.c.l.bf16 %v301
    %v314 = vunpack.c.h.bf16 %v301
    %v315 = vunpack.c.l.bf16 %v302
    %v316 = vunpack.c.h.bf16 %v302
    %v317 = vunpack.c.l.bf16 %v303
    %v318 = vunpack.c.h.bf16 %v303
    %v319 = vunpack.c.l.bf16 %v304
    %v320 = vunpack.c.h.bf16 %v304
    %v321 = vmul.f32 %v305, 1.442695
    %v322 = vpow.pop %v321
    %v323 = vmul.f32 %v306, 1.442695
    %v324 = vpow.pop %v323
    %v325 = vmul.f32 %v307, 1.442695
    %v326 = vpow.pop %v325
    %v327 = vmul.f32 %v308, 1.442695
    %v328 = vpow.pop %v327
    %v329 = vmul.f32 %v309, 1.442695
    %v330 = vpow.pop %v329
    %v331 = vmul.f32 %v310, 1.442695
    %v332 = vpow.pop %v331
    %v333 = vmul.f32 %v311, 1.442695
    %v334 = vpow.pop %v333
    %v335 = vmul.f32 %v312, 1.442695
    %v336 = vpow.pop %v335
    %v337 = vmul.f32 %v313, 1.442695
    %v338 = vpow.pop %v337
    %v339 = vmul.f32 %v314, 1.442695
    %v340 = vpow.pop %v339
    %v341 = vmul.f32 %v315, 1.442695
    %v342 = vpow.pop %v341
    %v343 = vmul.f32 %v316, 1.442695
    %v344 = vpow.pop %v343
    %v345 = vmul.f32 %v317, 1.442695
    %v346 = vpow.pop %v345
    %v347 = vmul.f32 %v318, 1.442695
    %v348 = vpow.pop %v347
    %v349 = vmul.f32 %v319, 1.442695
    %v350 = vpow.pop %v349
    %v351 = vmul.f32 %v320, 1.442695
    %v352 = vpow.pop %v351
    %v353 = vpack.c.bf16 %v324, %v322
    %v354 = vpack.c.bf16 %v328, %v326
    %v355 = vpack.c.bf16 %v332, %v330
    %v356 = vpack.c.bf16 %v336, %v334
    %v357 = vpack.c.bf16 %v340, %v338
    %v358 = vpack.c.bf16 %v344, %v342
    %v359 = vpack.c.bf16 %v348, %v346
    %v360 = vpack.c.bf16 %v352, %v350
    %v361 = vunpack.c.l.bf16 %v353
    %v362 = vunpack.c.h.bf16 %v353
    %v363 = vunpack.c.l.bf16 %v354
    %v364 = vunpack.c.h.bf16 %v354
    %v365 = vunpack.c.l.bf16 %v355
    %v366 = vunpack.c.h.bf16 %v355
    %v367 = vunpack.c.l.bf16 %v356
    %v368 = vunpack.c.h.bf16 %v356
    %v369 = vunpack.c.l.bf16 %v357
    %v370 = vunpack.c.h.bf16 %v357
    %v371 = vunpack.c.l.bf16 %v358
    %v372 = vunpack.c.h.bf16 %v358
    %v373 = vunpack.c.l.bf16 %v359
    %v374 = vunpack.c.h.bf16 %v359
    %v375 = vunpack.c.l.bf16 %v360
    %v376 = vunpack.c.h.bf16 %v360
    %v377 = vadd.f32 %v361, %v362
    %v378 = vadd.f32 %v377, %v363
    %v379 = vadd.f32 %v378, %v364
    %v380 = vadd.f32 %v379, %v365
    %v381 = vadd.f32 %v380, %v366
    %v382 = vadd.f32 %v381, %v367
    %v383 = vadd.f32 %v382, %v368
    %v384 = vadd.f32 %v383, %v369
    %v385 = vadd.f32 %v384, %v370
    %v386 = vadd.f32 %v385, %v371
    %v387 = vadd.f32 %v386, %v372
    %v388 = vadd.f32 %v387, %v373
    %v389 = vadd.f32 %v388, %v374
    %v390 = vadd.f32 %v389, %v375
    %v391 = vadd.f32 %v390, %v376
    %v392 = vrot.slane %v391, 4
    %v393 = vadd.f32 %v391, %v392
    %v394 = vrot.slane %v393, 2
    %v395 = vadd.f32 %v393, %v394
    %v396 = vrot.slane %v395, 1
    %v397 = vadd.f32 %v395, %v396
    %v402 = vunpack.c.l.b16 %v162
    %v403 = vunpack.c.l.b16 %v163
    %v404 = vunpack.c.l.b16 %v164
    %v405 = vunpack.c.l.b16 %v165
    %v406 = vpack.c.b16 %v403, %v402
    %v407 = vpack.c.b16 %v405, %v404
    %410 = vmatpush.bf16.msra.mxu0 %v360
    %411 = vmatpush.bf16.msra.mxu0 %v359
    %412 = vmatpush.bf16.msra.mxu0 %v358
    %413 = vmatpush.bf16.msra.mxu0 %v357
    %414 = vmatpush.bf16.msra.mxu0 %v356
    %415 = vmatpush.bf16.msra.mxu0 %v355
    %416 = vmatpush.bf16.msra.mxu0 %v354
    %417 = vmatpush.bf16.msra.mxu0 %v353
    %418 = vmatmul.bf16.gmra.mxu0 %v406
    %v419 = vpop.f32.mrf.mxu0
    %v420 = vadd.f32 0.0, %v419
    %v421 = vpop.f32.mrf.mxu0
    %v422 = vadd.f32 0.0, %v421
    %423 = vmatmul.bf16.gmra.mxu0 %v407
    %v424 = vpop.f32.mrf.mxu0
    %v425 = vadd.f32 0.0, %v424
    %v426 = vpop.f32.mrf.mxu0
    %v427 = vadd.f32 0.0, %v426
    %428 = vdwg.mxu0
    %v429 = vrcp.pop %v397
    %v430 = vstv %s20
    %v431 = vmul.f32 %v430, %v429
    %v432 = vmul.f32 %v431, %v420
    %v433 = vmul.f32 %v431, %v422
    %v434 = vmul.f32 %v431, %v425
    %v435 = vmul.f32 %v431, %v427
    %v436 = vld [vmem:[%s0] sm:$0xff]
    %v437 = vld [vmem:[%s0 + $0x10] sm:$0xff]
    %v438 = vld [vmem:[%s0 + $0x20] sm:$0xff]
    %v439 = vld [vmem:[%s0 + $0x30] sm:$0xff]
    %v440 = vadd.f32 %v432, %v436
    %v441 = vadd.f32 %v433, %v437
    %v442 = vadd.f32 %v434, %v438
    %v443 = vadd.f32 %v435, %v439
    %444 = vst [vmem:[#allocation4] sm:$0xff] %v440
    %445 = vst [vmem:[#allocation4 + $0x8] sm:$0xff] %v441
    %446 = vst [vmem:[#allocation4 + $0x10] sm:$0xff] %v442
    %447 = vst [vmem:[#allocation4 + $0x18] sm:$0xff] %v443
    %v448 = vld [vmem:[#allocation2 + $0x4] sm:$0xf]
    %v449 = vld [vmem:[#allocation2 + $0xc] sm:$0xf]
    %v450 = vld [vmem:[#allocation2 + $0x14] sm:$0xf]
    %v451 = vld [vmem:[#allocation2 + $0x1c] sm:$0xf]
    %v452 = vld [vmem:[#allocation2 + $0x24] sm:$0xf]
    %v453 = vld [vmem:[#allocation2 + $0x2c] sm:$0xf]
    %454 = vxpose.xlu0.c.b16.start [1/8] %v449, 128
    %455 = vxpose.xlu0.c.b16.cont [2/8] 0, 128
    %456 = vxpose.xlu0.c.b16.cont [3/8] 0, 128
    %457 = vxpose.xlu0.c.b16.cont [4/8] 0, 128
    %458 = vxpose.xlu0.c.b16.cont [5/8] 0, 128
    %459 = vxpose.xlu0.c.b16.cont [6/8] 0, 128
    %460 = vxpose.xlu0.c.b16.cont [7/8] 0, 128
    %461 = vxpose.xlu0.c.b16.end [8/8] 0, 128
    %v462 = vpop.trf.xlu0
    %v463 = vpop.trf.xlu0
    %v464 = vpop.trf.xlu0
    %v465 = vpop.trf.xlu0
    %v466 = vpop.trf.xlu0
    %v467 = vpop.trf.xlu0
    %v468 = vpop.trf.xlu0
    %v469 = vpop.trf.xlu0
    %v471 = vsel %vm182, %v462, 0
    %v474 = vsel %vm182, %v463, 0
    %v477 = vsel %vm182, %v464, 0
    %v480 = vsel %vm182, %v465, 0
    %v483 = vsel %vm182, %v466, 0
    %v486 = vsel %vm182, %v467, 0
    %v489 = vsel %vm182, %v468, 0
    %v492 = vsel %vm182, %v469, 0
    %v495 = vsel %vm207, %v448, 0
    %497 = vmatpush.bf16.msra.mxu0 0
    %498 = vmatpush.bf16.msra.mxu0 0
    %499 = vmatpush.bf16.msra.mxu0 0
    %500 = vmatpush.bf16.msra.mxu0 0
    %501 = vmatpush.bf16.msra.mxu0 0
    %502 = vmatpush.bf16.msra.mxu0 0
    %503 = vmatpush.bf16.msra.mxu0 0
    %504 = vmatpush.bf16.msra.mxu0 %v495
    %505 = vmatmul.bf16.gmra.mxu0 %v471
    %v506 = vpop.f32.mrf.mxu0
    %v507 = vadd.f32 0.0, %v506
    %v508 = vpop.f32.mrf.mxu0
    %v509 = vadd.f32 0.0, %v508
    %510 = vmatmul.bf16.gmra.mxu0 %v474
    %v511 = vpop.f32.mrf.mxu0
    %v512 = vadd.f32 0.0, %v511
    %v513 = vpop.f32.mrf.mxu0
    %v514 = vadd.f32 0.0, %v513
    %515 = vmatmul.bf16.gmra.mxu0 %v477
    %v516 = vpop.f32.mrf.mxu0
    %v517 = vadd.f32 0.0, %v516
    %v518 = vpop.f32.mrf.mxu0
    %v519 = vadd.f32 0.0, %v518
    %520 = vmatmul.bf16.gmra.mxu0 %v480
    %v521 = vpop.f32.mrf.mxu0
    %v522 = vadd.f32 0.0, %v521
    %v523 = vpop.f32.mrf.mxu0
    %v524 = vadd.f32 0.0, %v523
    %525 = vmatmul.bf16.gmra.mxu0 %v483
    %v526 = vpop.f32.mrf.mxu0
    %v527 = vadd.f32 0.0, %v526
    %v528 = vpop.f32.mrf.mxu0
    %v529 = vadd.f32 0.0, %v528
    %530 = vmatmul.bf16.gmra.mxu0 %v486
    %v531 = vpop.f32.mrf.mxu0
    %v532 = vadd.f32 0.0, %v531
    %v533 = vpop.f32.mrf.mxu0
    %v534 = vadd.f32 0.0, %v533
    %535 = vmatmul.bf16.gmra.mxu0 %v489
    %v536 = vpop.f32.mrf.mxu0
    %v537 = vadd.f32 0.0, %v536
    %v538 = vpop.f32.mrf.mxu0
    %v539 = vadd.f32 0.0, %v538
    %540 = vmatmul.bf16.gmra.mxu0 %v492
    %v541 = vpop.f32.mrf.mxu0
    %v542 = vadd.f32 0.0, %v541
    %v543 = vpop.f32.mrf.mxu0
    %v544 = vadd.f32 0.0, %v543
    %545 = vdwg.mxu0
    %v546 = vmax.f32 %v507, %v517
    %v547 = vmax.f32 %v509, %v519
    %v548 = vmax.f32 %v512, %v522
    %v549 = vmax.f32 %v514, %v524
    %v550 = vmax.f32 %v546, %v527
    %v551 = vmax.f32 %v547, %v529
    %v552 = vmax.f32 %v548, %v532
    %v553 = vmax.f32 %v549, %v534
    %v554 = vmax.f32 %v550, %v537
    %v555 = vmax.f32 %v551, %v539
    %v556 = vmax.f32 %v552, %v542
    %v557 = vmax.f32 %v553, %v544
    %v558 = vmax.f32 %v554, %v555
    %v559 = vmax.f32 %v556, %v557
    %v560 = vmax.f32 %v558, %v559
    %v561 = vrot.slane %v560, 4
    %v562 = vmax.f32 %v560, %v561
    %v563 = vrot.slane %v562, 2
    %v564 = vmax.f32 %v562, %v563
    %v565 = vrot.slane %v564, 1
    %v566 = vmax.f32 %v564, %v565
    %v567 = vsub.f32 %v507, %v566
    %v568 = vsub.f32 %v509, %v566
    %v569 = vsub.f32 %v512, %v566
    %v570 = vsub.f32 %v514, %v566
    %v571 = vsub.f32 %v517, %v566
    %v572 = vsub.f32 %v519, %v566
    %v573 = vsub.f32 %v522, %v566
    %v574 = vsub.f32 %v524, %v566
    %v575 = vsub.f32 %v527, %v566
    %v576 = vsub.f32 %v529, %v566
    %v577 = vsub.f32 %v532, %v566
    %v578 = vsub.f32 %v534, %v566
    %v579 = vsub.f32 %v537, %v566
    %v580 = vsub.f32 %v539, %v566
    %v581 = vsub.f32 %v542, %v566
    %v582 = vsub.f32 %v544, %v566
    %v583 = vpack.c.bf16 %v568, %v567
    %v584 = vpack.c.bf16 %v570, %v569
    %v585 = vpack.c.bf16 %v572, %v571
    %v586 = vpack.c.bf16 %v574, %v573
    %v587 = vpack.c.bf16 %v576, %v575
    %v588 = vpack.c.bf16 %v578, %v577
    %v589 = vpack.c.bf16 %v580, %v579
    %v590 = vpack.c.bf16 %v582, %v581
    %v591 = vunpack.c.l.bf16 %v583
    %v592 = vunpack.c.h.bf16 %v583
    %v593 = vunpack.c.l.bf16 %v584
    %v594 = vunpack.c.h.bf16 %v584
    %v595 = vunpack.c.l.bf16 %v585
    %v596 = vunpack.c.h.bf16 %v585
    %v597 = vunpack.c.l.bf16 %v586
    %v598 = vunpack.c.h.bf16 %v586
    %v599 = vunpack.c.l.bf16 %v587
    %v600 = vunpack.c.h.bf16 %v587
    %v601 = vunpack.c.l.bf16 %v588
    %v602 = vunpack.c.h.bf16 %v588
    %v603 = vunpack.c.l.bf16 %v589
    %v604 = vunpack.c.h.bf16 %v589
    %v605 = vunpack.c.l.bf16 %v590
    %v606 = vunpack.c.h.bf16 %v590
    %v607 = vmul.f32 %v591, 1.442695
    %v608 = vpow.pop %v607
    %v609 = vmul.f32 %v592, 1.442695
    %v610 = vpow.pop %v609
    %v611 = vmul.f32 %v593, 1.442695
    %v612 = vpow.pop %v611
    %v613 = vmul.f32 %v594, 1.442695
    %v614 = vpow.pop %v613
    %v615 = vmul.f32 %v595, 1.442695
    %v616 = vpow.pop %v615
    %v617 = vmul.f32 %v596, 1.442695
    %v618 = vpow.pop %v617
    %v619 = vmul.f32 %v597, 1.442695
    %v620 = vpow.pop %v619
    %v621 = vmul.f32 %v598, 1.442695
    %v622 = vpow.pop %v621
    %v623 = vmul.f32 %v599, 1.442695
    %v624 = vpow.pop %v623
    %v625 = vmul.f32 %v600, 1.442695
    %v626 = vpow.pop %v625
    %v627 = vmul.f32 %v601, 1.442695
    %v628 = vpow.pop %v627
    %v629 = vmul.f32 %v602, 1.442695
    %v630 = vpow.pop %v629
    %v631 = vmul.f32 %v603, 1.442695
    %v632 = vpow.pop %v631
    %v633 = vmul.f32 %v604, 1.442695
    %v634 = vpow.pop %v633
    %v635 = vmul.f32 %v605, 1.442695
    %v636 = vpow.pop %v635
    %v637 = vmul.f32 %v606, 1.442695
    %v638 = vpow.pop %v637
    %v639 = vpack.c.bf16 %v610, %v608
    %v640 = vpack.c.bf16 %v614, %v612
    %v641 = vpack.c.bf16 %v618, %v616
    %v642 = vpack.c.bf16 %v622, %v620
    %v643 = vpack.c.bf16 %v626, %v624
    %v644 = vpack.c.bf16 %v630, %v628
    %v645 = vpack.c.bf16 %v634, %v632
    %v646 = vpack.c.bf16 %v638, %v636
    %v647 = vunpack.c.l.bf16 %v639
    %v648 = vunpack.c.h.bf16 %v639
    %v649 = vunpack.c.l.bf16 %v640
    %v650 = vunpack.c.h.bf16 %v640
    %v651 = vunpack.c.l.bf16 %v641
    %v652 = vunpack.c.h.bf16 %v641
    %v653 = vunpack.c.l.bf16 %v642
    %v654 = vunpack.c.h.bf16 %v642
    %v655 = vunpack.c.l.bf16 %v643
    %v656 = vunpack.c.h.bf16 %v643
    %v657 = vunpack.c.l.bf16 %v644
    %v658 = vunpack.c.h.bf16 %v644
    %v659 = vunpack.c.l.bf16 %v645
    %v660 = vunpack.c.h.bf16 %v645
    %v661 = vunpack.c.l.bf16 %v646
    %v662 = vunpack.c.h.bf16 %v646
    %v663 = vadd.f32 %v647, %v648
    %v664 = vadd.f32 %v663, %v649
    %v665 = vadd.f32 %v664, %v650
    %v666 = vadd.f32 %v665, %v651
    %v667 = vadd.f32 %v666, %v652
    %v668 = vadd.f32 %v667, %v653
    %v669 = vadd.f32 %v668, %v654
    %v670 = vadd.f32 %v669, %v655
    %v671 = vadd.f32 %v670, %v656
    %v672 = vadd.f32 %v671, %v657
    %v673 = vadd.f32 %v672, %v658
    %v674 = vadd.f32 %v673, %v659
    %v675 = vadd.f32 %v674, %v660
    %v676 = vadd.f32 %v675, %v661
    %v677 = vadd.f32 %v676, %v662
    %v678 = vrot.slane %v677, 4
    %v679 = vadd.f32 %v677, %v678
    %v680 = vrot.slane %v679, 2
    %v681 = vadd.f32 %v679, %v680
    %v682 = vrot.slane %v681, 1
    %v683 = vadd.f32 %v681, %v682
    %v688 = vunpack.c.l.b16 %v450
    %v689 = vunpack.c.l.b16 %v451
    %v690 = vunpack.c.l.b16 %v452
    %v691 = vunpack.c.l.b16 %v453
    %v692 = vpack.c.b16 %v689, %v688
    %v693 = vpack.c.b16 %v691, %v690
    %696 = vmatpush.bf16.msra.mxu0 %v646
    %697 = vmatpush.bf16.msra.mxu0 %v645
    %698 = vmatpush.bf16.msra.mxu0 %v644
    %699 = vmatpush.bf16.msra.mxu0 %v643
    %700 = vmatpush.bf16.msra.mxu0 %v642
    %701 = vmatpush.bf16.msra.mxu0 %v641
    %702 = vmatpush.bf16.msra.mxu0 %v640
    %703 = vmatpush.bf16.msra.mxu0 %v639
    %704 = vmatmul.bf16.gmra.mxu0 %v692
    %v705 = vpop.f32.mrf.mxu0
    %v706 = vadd.f32 0.0, %v705
    %v707 = vpop.f32.mrf.mxu0
    %v708 = vadd.f32 0.0, %v707
    %709 = vmatmul.bf16.gmra.mxu0 %v693
    %v710 = vpop.f32.mrf.mxu0
    %v711 = vadd.f32 0.0, %v710
    %v712 = vpop.f32.mrf.mxu0
    %v713 = vadd.f32 0.0, %v712
    %714 = vdwg.mxu0
    %v715 = vrcp.pop %v683
    %v716 = vmul.f32 %v430, %v715
    %v717 = vmul.f32 %v716, %v706
    %v718 = vmul.f32 %v716, %v708
    %v719 = vmul.f32 %v716, %v711
    %v720 = vmul.f32 %v716, %v713
    %v721 = vld [vmem:[%s0 + $0x8] sm:$0xff]
    %v722 = vld [vmem:[%s0 + $0x18] sm:$0xff]
    %v723 = vld [vmem:[%s0 + $0x28] sm:$0xff]
    %v724 = vld [vmem:[%s0 + $0x38] sm:$0xff]
    %v725 = vadd.f32 %v717, %v721
    %v726 = vadd.f32 %v718, %v722
    %v727 = vadd.f32 %v719, %v723
    %v728 = vadd.f32 %v720, %v724
    %s729 = scalar_lea.vmem [#allocation4], 32
    %730 = vst [vmem:[%s729] sm:$0xff] %v725
    %731 = vst [vmem:[%s729 + $0x8] sm:$0xff] %v726
    %732 = vst [vmem:[%s729 + $0x10] sm:$0xff] %v727
    %733 = vst [vmem:[%s729 + $0x18] sm:$0xff] %v728
    // Predicated region
    $region18: #{tpu_custom_call.1} parent=1 // pred_check
      _
    $region19: #{tpu_custom_call.1} parent=1 // pred_check_branch
      %735 = sbr.rel (0) target = $region21
    $region20: #{tpu_custom_call.1} parent=1 // pred_region
      %737 = vsyncadd [#allocation5], 0
      %s738 = sshll.u32 [#allocation4], 4
      %s739 = int_to_ptr.vmem [resolvable:$true] %s738
      %s740 = sshll.u32 %s4, 4
      %s741 = int_to_ptr.hbm [resolvable:$true] %s740
      %746 = dma.vmem_to_hbm [thread:$0]  %s739, 1024, %s741, [#allocation5], 128, 128, 8
    $region21: #{tpu_custom_call.1} parent=1 // pred_fallthru
      _
    // Predicated region
    $region22: #{tpu_custom_call.1} parent=1 // pred_check
      _
    $region23: #{tpu_custom_call.1} parent=1 // pred_check_branch
      %748 = sbr.rel (0) target = $region25
    $region24: #{tpu_custom_call.1} parent=1 // pred_region
      %750 = dma.done [#allocation5], 1024
    $region25: #{tpu_custom_call.1} parent=1 // pred_fallthru
      _
    %751 = vsyncpa [#allocation5], 1

</llo_original>
